<compile_context>
chip_gen: v6e
topology: v6e:2x2x1
jax: 0.10.0
libtpu: 0.0.40
codegen_flags: <defaults>
</compile_context>

<pallas_src>
import jax
import jax.numpy as jnp
from jax.experimental import pallas as pl
from jax.experimental.pallas import tpu as pltpu

LANE = 128
SUBLANE = 8


def _round_up(v, m):
    return -(-v // m) * m


def _elu(x):
    # nn.ELU(alpha=1.0).  NOTE(review): jnp.expm1 would be marginally more
    # precise near 0; exp(x)-1 is kept to stay on the minimal guaranteed
    # Mosaic op set -- the difference is far below the bf16 parameter
    # quantization applied for DMA bandwidth.
    return jnp.where(x > 0.0, x, jnp.exp(x) - 1.0)


def act_inference_kernel(
    xin_ref, m0w_ref, m0b_ref,
    w0_ref, bz0_ref, mb0_ref,
    w1_ref, bz1_ref, mb1_ref,
    w2_ref, bz2_ref, mb2_ref,
    w3_ref, bz3_ref, mb3_ref,
    out_ref,
):
    f32, bf16 = jnp.float32, jnp.bfloat16
    B = xin_ref.shape[0]

    # Packed, lane-dense input: [obs | context | zero-pad].  The modulator's
    # first Linear is pre-padded into this frame, so no in-kernel slicing.
    x = xin_ref[...]
    r = jnp.dot(x.astype(bf16), m0w_ref[...],
                preferred_element_type=f32) + m0b_ref[...]

    layers = (
        (w0_ref, bz0_ref, mb0_ref),
        (w1_ref, bz1_ref, mb1_ref),
        (w2_ref, bz2_ref, mb2_ref),
        (w3_ref, bz3_ref, mb3_ref),
    )
    n = len(layers)
    for k, (w, bz, mb) in enumerate(layers):
        # K-fused modulated linear.  RHS pre-stacked as [[Wb],[Wm_pad]] (2in,out):
        #   rows [:B] = [x, x*r] -> x@Wb + (x*r)@Wm   (base + "delta" part)
        #   rows [B:] = [0,   r] ->          r @Wm    (residual chain)
        # One MXU weight push per layer instead of two dots + axis-0 concat.
        top = jnp.concatenate([x, x * r], axis=1)
        bot = jnp.concatenate([jnp.zeros_like(x), r], axis=1)
        zz = jnp.dot(jnp.concatenate([top, bot], axis=0).astype(bf16),
                     w[...], preferred_element_type=f32)
        z = zz[:B] + bz[...]      # bz = base bias + zero-padded modulator bias (f32)
        r = zz[B:] + mb[...]      # residual-chain update, no activation
        # modulated_linear(): out[torch.isnan(out)] = 0
        # TODO(synk): with NaN-containing inputs the zero-padded modulator
        # weights propagate NaN into unmodulated output columns (0*NaN=NaN),
        # which torch's partial-column update would leave finite; normal-range
        # inputs are unaffected.
        z = jnp.where(jnp.isnan(z), 0.0, z)
        x = z if k == n - 1 else _elu(z)          # base actor interleaves ELU

    out_ref[...] = x.astype(out_ref.dtype)


def _pad2(a, shape):
    out = jnp.zeros(shape, a.dtype)
    return out.at[: a.shape[0], : a.shape[1]].set(a)


def prepare_params(mod_ws, mod_bs, base_ws, base_bs, *, param_dtype=jnp.bfloat16):
    """Pack PyTorch-layout params for the kernel.  Call ONCE and cache (review):
      * transpose every weight to (in, out),
      * zero-pad modulator params up to the matching base dims,
      * place layer-0 weights in the packed [obs | ctx | 0] input frame,
      * K-stack each layer's base + modulator weights into one (2*in, out) RHS,
      * pre-fuse base bias + padded modulator bias,
      * lane-pad the final output dim to 128,
      * weights in bf16 (DMA/MXU), all biases kept in float32."""
    n = len(base_ws)
    obs_dim = base_ws[0].shape[1]
    ctx_dim = mod_ws[0].shape[1]
    mod0_out = mod_ws[0].shape[0]
    pack = _round_up(max(obs_dim + ctx_dim, LANE), LANE)

    D_pad = [pack] + [w.shape[0] for w in base_ws]
    D_pad[-1] = _round_up(max(D_pad[-1], LANE), LANE)      # lane-dense output store

    f32 = jnp.float32
    # Modulator layer 0 in the packed frame: context columns live at
    # [obs_dim : obs_dim+ctx_dim]; its outputs land at columns [0:mod0_out] so
    # that x*r lines up component-wise with obs (torch's x[:, :mod_in]).
    m0w = jnp.zeros((pack, pack), f32)
    m0w = m0w.at[obs_dim:obs_dim + ctx_dim, :mod0_out].set(mod_ws[0].T.astype(f32))
    m0b = jnp.zeros((1, pack), f32).at[0, :mod0_out].set(mod_bs[0].astype(f32))

    params = [m0w.astype(param_dtype), m0b]
    for k in range(n):
        bw = _pad2(base_ws[k].T.astype(f32), (D_pad[k], D_pad[k + 1]))
        mw = _pad2(mod_ws[k + 1].T.astype(f32), (D_pad[k], D_pad[k + 1]))
        bb = _pad2(base_bs[k][None, :].astype(f32), (1, D_pad[k + 1]))
        mb = _pad2(mod_bs[k + 1][None, :].astype(f32), (1, D_pad[k + 1]))
        params += [
            jnp.concatenate([bw, mw], axis=0).astype(param_dtype),   # (2*in, out) RHS
            bb + mb,                                                 # fused bias, f32
            mb,                                                      # residual bias, f32
        ]
    return params


def _pack_inputs(context, obs, pack, rows):
    """One lane-dense (rows, pack) f32 input stream: [obs | context | zero-pad]."""
    B, od = obs.shape
    cd = context.shape[1]
    xin = jnp.zeros((rows, pack), jnp.float32)
    xin = xin.at[:B, :od].set(obs.astype(jnp.float32))
    xin = xin.at[:B, od:od + cd].set(context.astype(jnp.float32))
    return xin


def recommended_batch_tile(batch, *, num_tensorcores=1):
    """Dispatch heuristic (perf review):
      * single-TC v5e/v6e: gridless whole-VMEM path up to a few thousand rows
        (each grid step is ~0.35us of pure overhead for a us-scale kernel);
      * dual-TC v7x (64 MiB VMEM): prefer the tiled path with >=2 'parallel'
        grid steps for rollout-sized batches (switch over at ~half the batch
        you would allow gridless on v6e);
      * tiles of 512-1024 rows amortize step overhead and cost <2 MiB VMEM."""
    if num_tensorcores > 1 and batch >= 2 * 256:
        return min(1024, _round_up(max(256, batch // (2 * num_tensorcores)), SUBLANE))
    if batch >= 4096:
        return 1024
    return None


def act_inference_pallas(context, obs, params, num_actions, *,
                         batch_tile=None, out_dtype=jnp.bfloat16):
    """batch_tile=None: single gridless invocation, everything VMEM-resident
    (small/medium batches, single-TC v5e/v6e).  batch_tile=TB: 1-D 'parallel'
    grid over batch tiles (v7x shards it across both TensorCores); weights use
    constant index maps and stay VMEM-resident while activation tiles pipeline."""
    B = obs.shape[0]
    pack = params[0].shape[0]
    out_pad = params[-1].shape[1]            # lane-padded action width

    if batch_tile is None:
        bp = _round_up(max(B, SUBLANE), SUBLANE)   # sublane-align the [:B]/[B:] split
        xin = _pack_inputs(context, obs, pack, bp)
        vmem = pl.BlockSpec(memory_space=pltpu.MemorySpace.VMEM)
        out = pl.pallas_call(
            act_inference_kernel,
            out_shape=jax.ShapeDtypeStruct((bp, out_pad), out_dtype),
            in_specs=[vmem] * (1 + len(params)),
            out_specs=vmem,
        )(xin, *params)
        return out[:B, :num_actions]

    tb = int(batch_tile)
    assert tb % SUBLANE == 0, "batch_tile must be a multiple of 8"
    bp = _round_up(B, tb)
    xin = _pack_inputs(context, obs, pack, bp)

    def const_spec(shape):
        # Constant-index-map params stay VMEM-resident; default double-buffering
        # costs only ~0.4 MiB total here, so the known-good blocked form is kept.
        return pl.BlockSpec(shape, lambda i: (0, 0))

    in_specs = ([pl.BlockSpec((tb, pack), lambda i: (i, 0))]
                + [const_spec(p.shape) for p in params])
    out = pl.pallas_call(
        act_inference_kernel,
        out_shape=jax.ShapeDtypeStruct((bp, out_pad), out_dtype),
        grid=(bp // tb,),
        in_specs=in_specs,
        out_specs=pl.BlockSpec((tb, out_pad), lambda i: (i, 0)),
        compiler_params=pltpu.CompilerParams(
            dimension_semantics=("parallel",)),
    )(xin, *params)
    return out[:B, :num_actions]


def reference_act_inference(context, obs, mod_ws, mod_bs, base_ws, base_bs):
    """Pure-JAX (f32) mirror of the PyTorch act_inference / modulated_linear."""
    r = context @ mod_ws[0].T + mod_bs[0]
    x = obs
    n = len(base_ws)
    for k in range(n):
        Wb, bb = base_ws[k], base_bs[k]
        Wm, bm = mod_ws[k + 1], mod_bs[k + 1]
        mo, mi = Wm.shape
        Bsz = x.shape[0]
        W_eff = jnp.broadcast_to(Wb, (Bsz,) + Wb.shape)
        W_eff = W_eff.at[:, :mo, :mi].add(r[:, None, :] * Wm[None, :, :])
        b_eff = jnp.broadcast_to(bb, (Bsz, bb.shape[0]))
        b_eff = b_eff.at[:, :mo].add(bm)
        z = jnp.einsum('bi,boi->bo', x, W_eff) + b_eff
        z = jnp.where(jnp.isnan(z), 0.0, z)
        r = r @ Wm.T + bm
        x = z if k == n - 1 else _elu(z)
    return x


if __name__ == "__main__":
    key = jax.random.PRNGKey(0)

    # Small but faithful configuration of ActorCriticModulator.__init__
    num_actor_obs = 32
    num_actions = 8
    context_dim = 4
    modulation_size = 0.5
    batch = 4

    mlp_input_dim_a = int(num_actor_obs * modulation_size)                 # 16
    mod_hidden = [int(256 * modulation_size), int(128 * modulation_size),
                  int(64 * modulation_size)]                               # [128, 64, 32]
    # Modulator actor Linear layers (out, in)
    mod_dims = [(mlp_input_dim_a, context_dim),
                (mod_hidden[0], mlp_input_dim_a),
                (mod_hidden[1], mod_hidden[0]),
                (mod_hidden[2], mod_hidden[1]),
                (num_actions, mod_hidden[2])]
    # Base actor being modulated (standard rsl_rl ActorCritic dims)
    base_hidden = [256, 128, 64]
    base_dims = [(base_hidden[0], num_actor_obs),
                 (base_hidden[1], base_hidden[0]),
                 (base_hidden[2], base_hidden[1]),
                 (num_actions, base_hidden[2])]

    nkeys = 2 * len(mod_dims) + 2 * len(base_dims) + 4
    keys = iter(jax.random.split(key, nkeys))

    # Modulator net: init is 0.02*randn weights / zero biases; small nonzero
    # biases (post-training values) are used so the bias-delta path is exercised.
    mod_ws = [0.02 * jax.random.normal(next(keys), (o, i), jnp.float32) for (o, i) in mod_dims]
    mod_bs = [0.01 * jax.random.normal(next(keys), (o,), jnp.float32) for (o, _) in mod_dims]
    # Base network is external; deterministic synthetic init.
    base_ws = [0.1 * jax.random.normal(next(keys), (o, i), jnp.float32) for (o, i) in base_dims]
    base_bs = [0.1 * jax.random.normal(next(keys), (o,), jnp.float32) for (o, _) in base_dims]

    context = jax.random.normal(next(keys), (batch, context_dim), jnp.float32)
    obs = jax.random.normal(next(keys), (batch, num_actor_obs), jnp.float32)

    # Pack / transpose / pad / K-stack parameters ONCE; reuse for every call.
    params = prepare_params(mod_ws, mod_bs, base_ws, base_bs)

    # --- gridless, fully VMEM-resident path (small batch; v5e/v6e default) ---
    out = jax.block_until_ready(
        act_inference_pallas(context, obs, params, num_actions))
    ref = reference_act_inference(context, obs, mod_ws, mod_bs, base_ws, base_bs)
    assert out.shape == (batch, num_actions)
    # Tolerance reflects bf16 weight / dot-operand / output quantization vs the
    # f32 spec reference (rel err ~2^-8 per dot, compounded over 4 layers).
    assert bool(jnp.allclose(out.astype(jnp.float32), ref, atol=5e-2, rtol=5e-2)), (out, ref)

    # --- batch-tiled path (rollout-sized batches / dual-TC v7x): 512-row tiles,
    #     >=2 'parallel' grid steps, weights VMEM-resident. ---
    big_batch, tile = 1024, 512
    ctx_big = jax.random.normal(next(keys), (big_batch, context_dim), jnp.float32)
    obs_big = jax.random.normal(next(keys), (big_batch, num_actor_obs), jnp.float32)
    out_tiled = act_inference_pallas(ctx_big, obs_big, params, num_actions,
                                     batch_tile=tile)
    out_whole = act_inference_pallas(ctx_big, obs_big, params, num_actions)
    out_tiled, out_whole = jax.block_until_ready((out_tiled, out_whole))
    assert out_tiled.shape == (big_batch, num_actions)
    assert bool(jnp.allclose(out_tiled.astype(jnp.float32),
                             out_whole.astype(jnp.float32), atol=1e-2, rtol=1e-2))

    print("KERNEL_OK")
</pallas_src>

<mosaic_0001>
module attributes {stable_mosaic.version = 11 : i64} {
  func.func @act_inference_kernel(%arg0: memref<8x128xf32, #tpu.memory_space<vmem>>, %arg1: memref<128x128xbf16, #tpu.memory_space<vmem>>, %arg2: memref<1x128xf32, #tpu.memory_space<vmem>>, %arg3: memref<256x256xbf16, #tpu.memory_space<vmem>>, %arg4: memref<1x256xf32, #tpu.memory_space<vmem>>, %arg5: memref<1x256xf32, #tpu.memory_space<vmem>>, %arg6: memref<512x128xbf16, #tpu.memory_space<vmem>>, %arg7: memref<1x128xf32, #tpu.memory_space<vmem>>, %arg8: memref<1x128xf32, #tpu.memory_space<vmem>>, %arg9: memref<256x64xbf16, #tpu.memory_space<vmem>>, %arg10: memref<1x64xf32, #tpu.memory_space<vmem>>, %arg11: memref<1x64xf32, #tpu.memory_space<vmem>>, %arg12: memref<128x128xbf16, #tpu.memory_space<vmem>>, %arg13: memref<1x128xf32, #tpu.memory_space<vmem>>, %arg14: memref<1x128xf32, #tpu.memory_space<vmem>>, %arg15: memref<8x128xbf16, #tpu.memory_space<vmem>>) attributes {dimension_semantics = [], scalar_prefetch = 0 : i64, scratch_operands = 0 : i64, tpu.core_type = #tpu.core_type<tc>} {
    %c0 = arith.constant 0 : index
    %c0_0 = arith.constant 0 : index
    %0 = vector.load %arg0[%c0, %c0_0] : memref<8x128xf32, #tpu.memory_space<vmem>>, vector<8x128xf32>
    %1 = arith.truncf %0 : vector<8x128xf32> to vector<8x128xbf16>
    %c0_1 = arith.constant 0 : index
    %c0_2 = arith.constant 0 : index
    %2 = vector.load %arg1[%c0_1, %c0_2] : memref<128x128xbf16, #tpu.memory_space<vmem>>, vector<128x128xbf16>
    %cst = arith.constant dense<0.000000e+00> : vector<8x128xf32>
    %3 = tpu.matmul %1, %2, %cst {dimension_numbers = #tpu.dot_dimension_numbers<[1], [0], [0], [1], [0, 0, 1, 1], [], []>} : vector<8x128xbf16>, vector<128x128xbf16>, vector<8x128xf32> -> vector<8x128xf32>
    %c0_3 = arith.constant 0 : index
    %c0_4 = arith.constant 0 : index
    %4 = vector.load %arg2[%c0_3, %c0_4] : memref<1x128xf32, #tpu.memory_space<vmem>>, vector<1x128xf32>
    %5 = vector.broadcast %4 : vector<1x128xf32> to vector<8x128xf32>
    %6 = arith.addf %3, %5 : vector<8x128xf32>
    %7 = arith.mulf %0, %6 : vector<8x128xf32>
    %8 = tpu.concatenate %0, %7 in 1 : vector<8x128xf32>, vector<8x128xf32> -> vector<8x256xf32>
    %cst_5 = arith.constant 0.000000e+00 : f32
    %9 = vector.broadcast %cst_5 : f32 to vector<8x128xf32>
    %10 = tpu.concatenate %9, %6 in 1 : vector<8x128xf32>, vector<8x128xf32> -> vector<8x256xf32>
    %11 = tpu.concatenate %8, %10 in 0 : vector<8x256xf32>, vector<8x256xf32> -> vector<16x256xf32>
    %12 = arith.truncf %11 : vector<16x256xf32> to vector<16x256xbf16>
    %c0_6 = arith.constant 0 : index
    %c0_7 = arith.constant 0 : index
    %13 = vector.load %arg3[%c0_6, %c0_7] : memref<256x256xbf16, #tpu.memory_space<vmem>>, vector<256x256xbf16>
    %cst_8 = arith.constant dense<0.000000e+00> : vector<16x256xf32>
    %14 = tpu.matmul %12, %13, %cst_8 {dimension_numbers = #tpu.dot_dimension_numbers<[1], [0], [0], [1], [0, 0, 1, 1], [], []>} : vector<16x256xbf16>, vector<256x256xbf16>, vector<16x256xf32> -> vector<16x256xf32>
    %15 = vector.extract_strided_slice %14 {offsets = [0, 0], sizes = [8, 256], strides = [1, 1]} : vector<16x256xf32> to vector<8x256xf32>
    %c0_9 = arith.constant 0 : index
    %c0_10 = arith.constant 0 : index
    %16 = vector.load %arg4[%c0_9, %c0_10] : memref<1x256xf32, #tpu.memory_space<vmem>>, vector<1x256xf32>
    %17 = vector.broadcast %16 : vector<1x256xf32> to vector<8x256xf32>
    %18 = arith.addf %15, %17 : vector<8x256xf32>
    %19 = vector.extract_strided_slice %14 {offsets = [8, 0], sizes = [8, 256], strides = [1, 1]} : vector<16x256xf32> to vector<8x256xf32>
    %c0_11 = arith.constant 0 : index
    %c0_12 = arith.constant 0 : index
    %20 = vector.load %arg5[%c0_11, %c0_12] : memref<1x256xf32, #tpu.memory_space<vmem>>, vector<1x256xf32>
    %21 = vector.broadcast %20 : vector<1x256xf32> to vector<8x256xf32>
    %22 = arith.addf %19, %21 : vector<8x256xf32>
    %23 = arith.cmpf one, %18, %18 : vector<8x256xf32>
    %cst_13 = arith.constant 0.000000e+00 : f32
    %24 = vector.broadcast %cst_13 : f32 to vector<8x256xf32>
    %25 = arith.select %23, %24, %18 : vector<8x256xi1>, vector<8x256xf32>
    %cst_14 = arith.constant 0.000000e+00 : f32
    %26 = vector.broadcast %cst_14 : f32 to vector<8x256xf32>
    %27 = arith.cmpf ogt, %25, %26 : vector<8x256xf32>
    %28 = math.exp %25 : vector<8x256xf32>
    %cst_15 = arith.constant 1.000000e+00 : f32
    %29 = vector.broadcast %cst_15 : f32 to vector<8x256xf32>
    %30 = arith.subf %28, %29 : vector<8x256xf32>
    %31 = arith.select %27, %25, %30 : vector<8x256xi1>, vector<8x256xf32>
    %32 = arith.mulf %31, %22 : vector<8x256xf32>
    %33 = tpu.concatenate %31, %32 in 1 : vector<8x256xf32>, vector<8x256xf32> -> vector<8x512xf32>
    %cst_16 = arith.constant 0.000000e+00 : f32
    %34 = vector.broadcast %cst_16 : f32 to vector<8x256xf32>
    %35 = tpu.concatenate %34, %22 in 1 : vector<8x256xf32>, vector<8x256xf32> -> vector<8x512xf32>
    %36 = tpu.concatenate %33, %35 in 0 : vector<8x512xf32>, vector<8x512xf32> -> vector<16x512xf32>
    %37 = arith.truncf %36 : vector<16x512xf32> to vector<16x512xbf16>
    %c0_17 = arith.constant 0 : index
    %c0_18 = arith.constant 0 : index
    %38 = vector.load %arg6[%c0_17, %c0_18] : memref<512x128xbf16, #tpu.memory_space<vmem>>, vector<512x128xbf16>
    %cst_19 = arith.constant dense<0.000000e+00> : vector<16x128xf32>
    %39 = tpu.matmul %37, %38, %cst_19 {dimension_numbers = #tpu.dot_dimension_numbers<[1], [0], [0], [1], [0, 0, 1, 1], [], []>} : vector<16x512xbf16>, vector<512x128xbf16>, vector<16x128xf32> -> vector<16x128xf32>
    %40 = vector.extract_strided_slice %39 {offsets = [0, 0], sizes = [8, 128], strides = [1, 1]} : vector<16x128xf32> to vector<8x128xf32>
    %c0_20 = arith.constant 0 : index
    %c0_21 = arith.constant 0 : index
    %41 = vector.load %arg7[%c0_20, %c0_21] : memref<1x128xf32, #tpu.memory_space<vmem>>, vector<1x128xf32>
    %42 = vector.broadcast %41 : vector<1x128xf32> to vector<8x128xf32>
    %43 = arith.addf %40, %42 : vector<8x128xf32>
    %44 = vector.extract_strided_slice %39 {offsets = [8, 0], sizes = [8, 128], strides = [1, 1]} : vector<16x128xf32> to vector<8x128xf32>
    %c0_22 = arith.constant 0 : index
    %c0_23 = arith.constant 0 : index
    %45 = vector.load %arg8[%c0_22, %c0_23] : memref<1x128xf32, #tpu.memory_space<vmem>>, vector<1x128xf32>
    %46 = vector.broadcast %45 : vector<1x128xf32> to vector<8x128xf32>
    %47 = arith.addf %44, %46 : vector<8x128xf32>
    %48 = arith.cmpf one, %43, %43 : vector<8x128xf32>
    %cst_24 = arith.constant 0.000000e+00 : f32
    %49 = vector.broadcast %cst_24 : f32 to vector<8x128xf32>
    %50 = arith.select %48, %49, %43 : vector<8x128xi1>, vector<8x128xf32>
    %cst_25 = arith.constant 0.000000e+00 : f32
    %51 = vector.broadcast %cst_25 : f32 to vector<8x128xf32>
    %52 = arith.cmpf ogt, %50, %51 : vector<8x128xf32>
    %53 = math.exp %50 : vector<8x128xf32>
    %cst_26 = arith.constant 1.000000e+00 : f32
    %54 = vector.broadcast %cst_26 : f32 to vector<8x128xf32>
    %55 = arith.subf %53, %54 : vector<8x128xf32>
    %56 = arith.select %52, %50, %55 : vector<8x128xi1>, vector<8x128xf32>
    %57 = arith.mulf %56, %47 : vector<8x128xf32>
    %58 = tpu.concatenate %56, %57 in 1 : vector<8x128xf32>, vector<8x128xf32> -> vector<8x256xf32>
    %cst_27 = arith.constant 0.000000e+00 : f32
    %59 = vector.broadcast %cst_27 : f32 to vector<8x128xf32>
    %60 = tpu.concatenate %59, %47 in 1 : vector<8x128xf32>, vector<8x128xf32> -> vector<8x256xf32>
    %61 = tpu.concatenate %58, %60 in 0 : vector<8x256xf32>, vector<8x256xf32> -> vector<16x256xf32>
    %62 = arith.truncf %61 : vector<16x256xf32> to vector<16x256xbf16>
    %c0_28 = arith.constant 0 : index
    %c0_29 = arith.constant 0 : index
    %63 = vector.load %arg9[%c0_28, %c0_29] : memref<256x64xbf16, #tpu.memory_space<vmem>>, vector<256x64xbf16>
    %cst_30 = arith.constant dense<0.000000e+00> : vector<16x64xf32>
    %64 = tpu.matmul %62, %63, %cst_30 {dimension_numbers = #tpu.dot_dimension_numbers<[1], [0], [0], [1], [0, 0, 1, 1], [], []>} : vector<16x256xbf16>, vector<256x64xbf16>, vector<16x64xf32> -> vector<16x64xf32>
    %65 = vector.extract_strided_slice %64 {offsets = [0, 0], sizes = [8, 64], strides = [1, 1]} : vector<16x64xf32> to vector<8x64xf32>
    %c0_31 = arith.constant 0 : index
    %c0_32 = arith.constant 0 : index
    %66 = vector.load %arg10[%c0_31, %c0_32] : memref<1x64xf32, #tpu.memory_space<vmem>>, vector<1x64xf32>
    %67 = vector.broadcast %66 : vector<1x64xf32> to vector<8x64xf32>
    %68 = arith.addf %65, %67 : vector<8x64xf32>
    %69 = vector.extract_strided_slice %64 {offsets = [8, 0], sizes = [8, 64], strides = [1, 1]} : vector<16x64xf32> to vector<8x64xf32>
    %c0_33 = arith.constant 0 : index
    %c0_34 = arith.constant 0 : index
    %70 = vector.load %arg11[%c0_33, %c0_34] : memref<1x64xf32, #tpu.memory_space<vmem>>, vector<1x64xf32>
    %71 = vector.broadcast %70 : vector<1x64xf32> to vector<8x64xf32>
    %72 = arith.addf %69, %71 : vector<8x64xf32>
    %73 = arith.cmpf one, %68, %68 : vector<8x64xf32>
    %cst_35 = arith.constant 0.000000e+00 : f32
    %74 = vector.broadcast %cst_35 : f32 to vector<8x64xf32>
    %75 = arith.select %73, %74, %68 : vector<8x64xi1>, vector<8x64xf32>
    %cst_36 = arith.constant 0.000000e+00 : f32
    %76 = vector.broadcast %cst_36 : f32 to vector<8x64xf32>
    %77 = arith.cmpf ogt, %75, %76 : vector<8x64xf32>
    %78 = math.exp %75 : vector<8x64xf32>
    %cst_37 = arith.constant 1.000000e+00 : f32
    %79 = vector.broadcast %cst_37 : f32 to vector<8x64xf32>
    %80 = arith.subf %78, %79 : vector<8x64xf32>
    %81 = arith.select %77, %75, %80 : vector<8x64xi1>, vector<8x64xf32>
    %82 = arith.mulf %81, %72 : vector<8x64xf32>
    %83 = tpu.concatenate %81, %82 in 1 : vector<8x64xf32>, vector<8x64xf32> -> vector<8x128xf32>
    %cst_38 = arith.constant 0.000000e+00 : f32
    %84 = vector.broadcast %cst_38 : f32 to vector<8x64xf32>
    %85 = tpu.concatenate %84, %72 in 1 : vector<8x64xf32>, vector<8x64xf32> -> vector<8x128xf32>
    %86 = tpu.concatenate %83, %85 in 0 : vector<8x128xf32>, vector<8x128xf32> -> vector<16x128xf32>
    %87 = arith.truncf %86 : vector<16x128xf32> to vector<16x128xbf16>
    %c0_39 = arith.constant 0 : index
    %c0_40 = arith.constant 0 : index
    %88 = vector.load %arg12[%c0_39, %c0_40] : memref<128x128xbf16, #tpu.memory_space<vmem>>, vector<128x128xbf16>
    %cst_41 = arith.constant dense<0.000000e+00> : vector<16x128xf32>
    %89 = tpu.matmul %87, %88, %cst_41 {dimension_numbers = #tpu.dot_dimension_numbers<[1], [0], [0], [1], [0, 0, 1, 1], [], []>} : vector<16x128xbf16>, vector<128x128xbf16>, vector<16x128xf32> -> vector<16x128xf32>
    %90 = vector.extract_strided_slice %89 {offsets = [0, 0], sizes = [8, 128], strides = [1, 1]} : vector<16x128xf32> to vector<8x128xf32>
    %c0_42 = arith.constant 0 : index
    %c0_43 = arith.constant 0 : index
    %91 = vector.load %arg13[%c0_42, %c0_43] : memref<1x128xf32, #tpu.memory_space<vmem>>, vector<1x128xf32>
    %92 = vector.broadcast %91 : vector<1x128xf32> to vector<8x128xf32>
    %93 = arith.addf %90, %92 : vector<8x128xf32>
    %94 = arith.cmpf one, %93, %93 : vector<8x128xf32>
    %cst_44 = arith.constant 0.000000e+00 : f32
    %95 = vector.broadcast %cst_44 : f32 to vector<8x128xf32>
    %96 = arith.select %94, %95, %93 : vector<8x128xi1>, vector<8x128xf32>
    %97 = arith.truncf %96 : vector<8x128xf32> to vector<8x128xbf16>
    %c0_45 = arith.constant 0 : index
    %c0_46 = arith.constant 0 : index
    %98 = vector.load %arg15[%c0_45, %c0_46] : memref<8x128xbf16, #tpu.memory_space<vmem>>, vector<8x128xbf16>
    tpu.vector_store %arg15[%c0_45, %c0_46], %97 {strides = array<i32>} : memref<8x128xbf16, #tpu.memory_space<vmem>>, vector<8x128xbf16>,
    return
  }
}

</mosaic_0001>

<llo_original>
// kernel: tpu_custom_call.1
$region0: #{tpu_custom_call.1}
  #allocation0 [shape = 'u32[]', space=smem, size = 0x4, offset = 0x4, fixed_abs, tag = 'smem constant byte address 0x4 - core index']
  #allocation1 [shape = 'u32[144,128]{1,0:T(1,128)}', space=vmem, size = 0x12000, scoped, tag = 'internal scratch']
  %s0 = inlined_call_operand.vmem [shape: f32[8,128], index: 0, kind: input, shape index: {}]
  %s1 = inlined_call_operand.vmem [shape: bf16[128,128], index: 1, kind: input, shape index: {}]
  %s2 = inlined_call_operand.vmem [shape: f32[1,128], index: 2, kind: input, shape index: {}]
  %s3 = inlined_call_operand.hbm [shape: bf16[256,256], index: 3, kind: input, shape index: {}]
  %s4 = inlined_call_operand.vmem [shape: f32[1,256], index: 4, kind: input, shape index: {}]
  %s5 = inlined_call_operand.vmem [shape: f32[1,256], index: 5, kind: input, shape index: {}]
  %s6 = inlined_call_operand.hbm [shape: bf16[512,128], index: 6, kind: input, shape index: {}]
  %s7 = inlined_call_operand.vmem [shape: f32[1,128], index: 7, kind: input, shape index: {}]
  %s8 = inlined_call_operand.vmem [shape: f32[1,128], index: 8, kind: input, shape index: {}]
  %s9 = inlined_call_operand.vmem [shape: bf16[256,64], index: 9, kind: input, shape index: {}]
  %s10 = inlined_call_operand.vmem [shape: f32[1,64], index: 10, kind: input, shape index: {}]
  %s11 = inlined_call_operand.vmem [shape: f32[1,64], index: 11, kind: input, shape index: {}]
  %s12 = inlined_call_operand.vmem [shape: bf16[128,128], index: 12, kind: input, shape index: {}]
  %s13 = inlined_call_operand.vmem [shape: f32[1,128], index: 13, kind: input, shape index: {}]
  %s14 = inlined_call_operand.vmem [shape: f32[1,128], index: 14, kind: input, shape index: {}]
  %s15 = inlined_call_operand.hbm [shape: bf16[8,128], index: 15, kind: output, shape index: {}]
  %s16 = sld [smem:[#allocation0]]
  $region78: #{tpu_custom_call.1} parent=0
    _
  %s18 = ssub.s32 1, %s16
  %s19 = scalar_select 0, %s18, %s16
  $region1: #{tpu_custom_call.1} parent=0
    #allocation2 [shape = 'u8[131072]{0}', space=vmem, size = 0x20000, scoped, tag = 'input window, operand 3, single buffered']
    #allocation3 [shape = 's32[1]{0}', space=sflag, size = 0x4, scoped, tag = 'scoped memory for tpu_custom_call.1']
    #allocation4 [shape = 's32[1]{0}', space=sflag, size = 0x4, scoped, tag = 'scoped memory for tpu_custom_call.1']
    #allocation5 [shape = 'u8[131072]{0}', space=vmem, size = 0x20000, scoped, tag = 'input window, operand 6, single buffered']
    #allocation6 [shape = 's32[1]{0}', space=sflag, size = 0x4, scoped, tag = 'scoped memory for tpu_custom_call.1']
    #allocation7 [shape = 'u8[2048]{0}', space=vmem, size = 0x800, scoped, tag = 'output window, operand 0, single buffered']
    %20 = vsyncpa [#allocation3], 0
    %21 = vsyncpa [#allocation6], 0
    %22 = vsyncpa [#allocation4], 0
    // Predicated region
    $region2: #{tpu_custom_call.1} parent=1 // pred_check
      _
    $region3: #{tpu_custom_call.1} parent=1 // pred_check_branch
      %24 = sbr.rel (0) target = $region5
    $region4: #{tpu_custom_call.1} parent=1 // pred_region
      _
    $region5: #{tpu_custom_call.1} parent=1 // pred_fallthru
      _
    // Predicated region
    $region6: #{tpu_custom_call.1} parent=1 // pred_check
      _
    $region7: #{tpu_custom_call.1} parent=1 // pred_check_branch
      %26 = sbr.rel (0) target = $region9
    $region8: #{tpu_custom_call.1} parent=1 // pred_region
      _
    $region9: #{tpu_custom_call.1} parent=1 // pred_fallthru
      _
    // Predicated region
    $region10: #{tpu_custom_call.1} parent=1 // pred_check
      _
    $region11: #{tpu_custom_call.1} parent=1 // pred_check_branch
      %28 = sbr.rel (0) target = $region13
    $region12: #{tpu_custom_call.1} parent=1 // pred_region
      _
    $region13: #{tpu_custom_call.1} parent=1 // pred_fallthru
      _
    // Predicated region
    $region14: #{tpu_custom_call.1} parent=1 // pred_check
      _
    $region15: #{tpu_custom_call.1} parent=1 // pred_check_branch
      %30 = sbr.rel (0) target = $region17
    $region16: #{tpu_custom_call.1} parent=1 // pred_region
      %s32 = ssub.s32 4096, 4096
      %33 = vsyncadd [#allocation3], %s32
      %s34 = sshll.u32 [#allocation2], 4
      %s35 = int_to_ptr.vmem [resolvable:$true] %s34
      %40 = dma.hbm_to_vmem [thread:$0]  %s3, 4096, %s35, [#allocation3], 128, 128, 8
    $region17: #{tpu_custom_call.1} parent=1 // pred_fallthru
      _
    // Predicated region
    $region18: #{tpu_custom_call.1} parent=1 // pred_check
      _
    $region19: #{tpu_custom_call.1} parent=1 // pred_check_branch
      %42 = sbr.rel (0) target = $region21
    $region20: #{tpu_custom_call.1} parent=1 // pred_region
      _
    $region21: #{tpu_custom_call.1} parent=1 // pred_fallthru
      _
    // Predicated region
    $region22: #{tpu_custom_call.1} parent=1 // pred_check
      _
    $region23: #{tpu_custom_call.1} parent=1 // pred_check_branch
      %44 = sbr.rel (0) target = $region25
    $region24: #{tpu_custom_call.1} parent=1 // pred_region
      _
    $region25: #{tpu_custom_call.1} parent=1 // pred_fallthru
      _
    // Predicated region
    $region26: #{tpu_custom_call.1} parent=1 // pred_check
      _
    $region27: #{tpu_custom_call.1} parent=1 // pred_check_branch
      %46 = sbr.rel (0) target = $region29
    $region28: #{tpu_custom_call.1} parent=1 // pred_region
      %s48 = ssub.s32 4096, 4096
      %49 = vsyncadd [#allocation6], %s48
      %s50 = sshll.u32 [#allocation5], 4
      %s51 = int_to_ptr.vmem [resolvable:$true] %s50
      %56 = dma.hbm_to_vmem [thread:$0]  %s6, 4096, %s51, [#allocation6], 64, 64, 4
    $region29: #{tpu_custom_call.1} parent=1 // pred_fallthru
      _
    // Predicated region
    $region30: #{tpu_custom_call.1} parent=1 // pred_check
      _
    $region31: #{tpu_custom_call.1} parent=1 // pred_check_branch
      %58 = sbr.rel (0) target = $region33
    $region32: #{tpu_custom_call.1} parent=1 // pred_region
      _
    $region33: #{tpu_custom_call.1} parent=1 // pred_fallthru
      _
    // Predicated region
    $region34: #{tpu_custom_call.1} parent=1 // pred_check
      _
    $region35: #{tpu_custom_call.1} parent=1 // pred_check_branch
      %60 = sbr.rel (0) target = $region37
    $region36: #{tpu_custom_call.1} parent=1 // pred_region
      _
    $region37: #{tpu_custom_call.1} parent=1 // pred_fallthru
      _
    // Predicated region
    $region38: #{tpu_custom_call.1} parent=1 // pred_check
      _
    $region39: #{tpu_custom_call.1} parent=1 // pred_check_branch
      %62 = sbr.rel (0) target = $region41
    $region40: #{tpu_custom_call.1} parent=1 // pred_region
      _
    $region41: #{tpu_custom_call.1} parent=1 // pred_fallthru
      _
    // Predicated region
    $region42: #{tpu_custom_call.1} parent=1 // pred_check
      _
    $region43: #{tpu_custom_call.1} parent=1 // pred_check_branch
      %64 = sbr.rel (0) target = $region45
    $region44: #{tpu_custom_call.1} parent=1 // pred_region
      _
    $region45: #{tpu_custom_call.1} parent=1 // pred_fallthru
      _
    // Predicated region
    $region46: #{tpu_custom_call.1} parent=1 // pred_check
      _
    $region47: #{tpu_custom_call.1} parent=1 // pred_check_branch
      %66 = sbr.rel (0) target = $region49
    $region48: #{tpu_custom_call.1} parent=1 // pred_region
      _
    $region49: #{tpu_custom_call.1} parent=1 // pred_fallthru
      _
    // Predicated region
    $region50: #{tpu_custom_call.1} parent=1 // pred_check
      _
    $region51: #{tpu_custom_call.1} parent=1 // pred_check_branch
      %68 = sbr.rel (0) target = $region53
    $region52: #{tpu_custom_call.1} parent=1 // pred_region
      _
    $region53: #{tpu_custom_call.1} parent=1 // pred_fallthru
      _
    // Predicated region
    $region54: #{tpu_custom_call.1} parent=1 // pred_check
      _
    $region55: #{tpu_custom_call.1} parent=1 // pred_check_branch
      %70 = sbr.rel (0) target = $region57
    $region56: #{tpu_custom_call.1} parent=1 // pred_region
      _
    $region57: #{tpu_custom_call.1} parent=1 // pred_fallthru
      _
    // Predicated region
    $region58: #{tpu_custom_call.1} parent=1 // pred_check
      _
    $region59: #{tpu_custom_call.1} parent=1 // pred_check_branch
      %72 = sbr.rel (0) target = $region61
    $region60: #{tpu_custom_call.1} parent=1 // pred_region
      _
    $region61: #{tpu_custom_call.1} parent=1 // pred_fallthru
      _
    // Predicated region
    $region62: #{tpu_custom_call.1} parent=1 // pred_check
      _
    $region63: #{tpu_custom_call.1} parent=1 // pred_check_branch
      %74 = sbr.rel (0) target = $region65
    $region64: #{tpu_custom_call.1} parent=1 // pred_region
      %75 = dma.done [#allocation3], 4096
    $region65: #{tpu_custom_call.1} parent=1 // pred_fallthru
      _
    // Predicated region
    $region66: #{tpu_custom_call.1} parent=1 // pred_check
      _
    $region67: #{tpu_custom_call.1} parent=1 // pred_check_branch
      %77 = sbr.rel (0) target = $region69
    $region68: #{tpu_custom_call.1} parent=1 // pred_region
      %78 = dma.done [#allocation6], 4096
    $region69: #{tpu_custom_call.1} parent=1 // pred_fallthru
      _
    %v80 = vld [vmem:[%s0] sm:$0xff]
    %v81 = vpack.c.bf16 %v80, %v80
    %v82 = vld [vmem:[%s1] sm:$0xf]
    %v83 = vld [vmem:[%s1 + $0x4] sm:$0xf]
    %v84 = vld [vmem:[%s1 + $0x8] sm:$0xf]
    %v85 = vld [vmem:[%s1 + $0xc] sm:$0xf]
    %v86 = vld [vmem:[%s1 + $0x10] sm:$0xf]
    %v87 = vld [vmem:[%s1 + $0x14] sm:$0xf]
    %v88 = vld [vmem:[%s1 + $0x18] sm:$0xf]
    %v89 = vld [vmem:[%s1 + $0x1c] sm:$0xf]
    %v90 = vld [vmem:[%s1 + $0x20] sm:$0xf]
    %v91 = vld [vmem:[%s1 + $0x24] sm:$0xf]
    %v92 = vld [vmem:[%s1 + $0x28] sm:$0xf]
    %v93 = vld [vmem:[%s1 + $0x2c] sm:$0xf]
    %v94 = vld [vmem:[%s1 + $0x30] sm:$0xf]
    %v95 = vld [vmem:[%s1 + $0x34] sm:$0xf]
    %v96 = vld [vmem:[%s1 + $0x38] sm:$0xf]
    %v97 = vld [vmem:[%s1 + $0x3c] sm:$0xf]
    %v98 = vld [vmem:[%s2] sm:$0x1]
    %v100 = vlaneseq
    %v101 = vshrl.u32 %v100, 7
    %v102 = vsub.s32 0, %v101
    %v103 = vrot.slane %v98, %v102
    %v121 = vunpack.c.l.b16 %v82
    %v122 = vunpack.c.l.b16 %v83
    %v123 = vunpack.c.l.b16 %v84
    %v124 = vunpack.c.l.b16 %v85
    %v125 = vunpack.c.l.b16 %v86
    %v126 = vunpack.c.l.b16 %v87
    %v127 = vunpack.c.l.b16 %v88
    %v128 = vunpack.c.l.b16 %v89
    %v129 = vunpack.c.l.b16 %v90
    %v130 = vunpack.c.l.b16 %v91
    %v131 = vunpack.c.l.b16 %v92
    %v132 = vunpack.c.l.b16 %v93
    %v133 = vunpack.c.l.b16 %v94
    %v134 = vunpack.c.l.b16 %v95
    %v135 = vunpack.c.l.b16 %v96
    %v136 = vunpack.c.l.b16 %v97
    %v137 = vpack.c.b16 %v122, %v121
    %v138 = vpack.c.b16 %v124, %v123
    %v139 = vpack.c.b16 %v126, %v125
    %v140 = vpack.c.b16 %v128, %v127
    %v141 = vpack.c.b16 %v130, %v129
    %v142 = vpack.c.b16 %v132, %v131
    %v143 = vpack.c.b16 %v134, %v133
    %v144 = vpack.c.b16 %v136, %v135
    %153 = vmatprep.subr.bf16.mxu0 0
    %154 = vmatpush1.bf16.msra.mxu0 %v144
    %155 = vmatprep.subr.bf16.mxu0 0
    %156 = vmatpush1.bf16.msra.mxu0 %v143
    %157 = vmatprep.subr.bf16.mxu0 0
    %158 = vmatpush1.bf16.msra.mxu0 %v142
    %159 = vmatprep.subr.bf16.mxu0 0
    %160 = vmatpush1.bf16.msra.mxu0 %v141
    %161 = vmatprep.subr.bf16.mxu0 0
    %162 = vmatpush1.bf16.msra.mxu0 %v140
    %163 = vmatprep.subr.bf16.mxu0 0
    %164 = vmatpush1.bf16.msra.mxu0 %v139
    %165 = vmatprep.subr.bf16.mxu0 0
    %166 = vmatpush1.bf16.msra.mxu0 %v138
    %167 = vmatprep.subr.bf16.mxu0 0
    %168 = vmatpush1.bf16.msra.mxu0 %v137
    %169 = vmatprep.subr.bf16.mxu0 0
    %170 = vmatpush2.bf16.msra.mxu0 0
    %171 = vmatprep.subr.bf16.mxu0 0
    %172 = vmatpush2.bf16.msra.mxu0 0
    %173 = vmatprep.subr.bf16.mxu0 0
    %174 = vmatpush2.bf16.msra.mxu0 0
    %175 = vmatprep.subr.bf16.mxu0 0
    %176 = vmatpush2.bf16.msra.mxu0 0
    %177 = vmatprep.subr.bf16.mxu0 0
    %178 = vmatpush2.bf16.msra.mxu0 0
    %179 = vmatprep.subr.bf16.mxu0 0
    %180 = vmatpush2.bf16.msra.mxu0 0
    %181 = vmatprep.subr.bf16.mxu0 0
    %182 = vmatpush2.bf16.msra.mxu0 0
    %183 = vmatprep.subr.bf16.mxu0 0
    %184 = vmatpush2.bf16.msra.mxu0 0
    %185 = vmatprep.mubr.bf16.mxu0 0
    %186 = vmatmul.mubr.bf16.gmra.mxu0 %v81
    %v187 = vpop.f32.mrf.mxu0
    %v188 = vadd.f32 %v103, %v187
    %v189 = vpop.f32.mrf.mxu0
    %v190 = vpop.f32.mrf.mxu0
    %v191 = vpop.f32.mrf.mxu0
    %192 = vdwg.mxu0
    %v193 = vmul.f32 %v80, %v188
    %v194 = vpack.c.bf16 0.0, %v80
    %v195 = vpack.c.bf16 %v188, %v193
    %v196 = vld [vmem:[#allocation2] sm:$0xff]
    %v197 = vld [vmem:[#allocation2 + $0x8] sm:$0xff]
    %v198 = vld [vmem:[#allocation2 + $0x10] sm:$0xff]
    %v199 = vld [vmem:[#allocation2 + $0x18] sm:$0xff]
    %v200 = vld [vmem:[#allocation2 + $0x20] sm:$0xff]
    %v201 = vld [vmem:[#allocation2 + $0x28] sm:$0xff]
    %v202 = vld [vmem:[#allocation2 + $0x30] sm:$0xff]
    %v203 = vld [vmem:[#allocation2 + $0x38] sm:$0xff]
    %v204 = vld [vmem:[#allocation2 + $0x40] sm:$0xff]
    %v205 = vld [vmem:[#allocation2 + $0x48] sm:$0xff]
    %v206 = vld [vmem:[#allocation2 + $0x50] sm:$0xff]
    %v207 = vld [vmem:[#allocation2 + $0x58] sm:$0xff]
    %v208 = vld [vmem:[#allocation2 + $0x60] sm:$0xff]
    %v209 = vld [vmem:[#allocation2 + $0x68] sm:$0xff]
    %v210 = vld [vmem:[#allocation2 + $0x70] sm:$0xff]
    %v211 = vld [vmem:[#allocation2 + $0x78] sm:$0xff]
    %v212 = vld [vmem:[#allocation2 + $0x80] sm:$0xff]
    %v213 = vld [vmem:[#allocation2 + $0x88] sm:$0xff]
    %v214 = vld [vmem:[#allocation2 + $0x90] sm:$0xff]
    %v215 = vld [vmem:[#allocation2 + $0x98] sm:$0xff]
    %v216 = vld [vmem:[#allocation2 + $0xa0] sm:$0xff]
    %v217 = vld [vmem:[#allocation2 + $0xa8] sm:$0xff]
    %v218 = vld [vmem:[#allocation2 + $0xb0] sm:$0xff]
    %v219 = vld [vmem:[#allocation2 + $0xb8] sm:$0xff]
    %v220 = vld [vmem:[#allocation2 + $0xc0] sm:$0xff]
    %v221 = vld [vmem:[#allocation2 + $0xc8] sm:$0xff]
    %v222 = vld [vmem:[#allocation2 + $0xd0] sm:$0xff]
    %v223 = vld [vmem:[#allocation2 + $0xd8] sm:$0xff]
    %v224 = vld [vmem:[#allocation2 + $0xe0] sm:$0xff]
    %v225 = vld [vmem:[#allocation2 + $0xe8] sm:$0xff]
    %v226 = vld [vmem:[#allocation2 + $0xf0] sm:$0xff]
    %v227 = vld [vmem:[#allocation2 + $0xf8] sm:$0xff]
    %v260 = vunpack.c.l.b16 %v196
    %v261 = vunpack.c.h.b16 %v196
    %v262 = vunpack.c.l.b16 %v197
    %v263 = vunpack.c.h.b16 %v197
    %v264 = vunpack.c.l.b16 %v198
    %v265 = vunpack.c.h.b16 %v198
    %v266 = vunpack.c.l.b16 %v199
    %v267 = vunpack.c.h.b16 %v199
    %v268 = vunpack.c.l.b16 %v200
    %v269 = vunpack.c.h.b16 %v200
    %v270 = vunpack.c.l.b16 %v201
    %v271 = vunpack.c.h.b16 %v201
    %v272 = vunpack.c.l.b16 %v202
    %v273 = vunpack.c.h.b16 %v202
    %v274 = vunpack.c.l.b16 %v203
    %v275 = vunpack.c.h.b16 %v203
    %v276 = vunpack.c.l.b16 %v204
    %v277 = vunpack.c.h.b16 %v204
    %v278 = vunpack.c.l.b16 %v205
    %v279 = vunpack.c.h.b16 %v205
    %v280 = vunpack.c.l.b16 %v206
    %v281 = vunpack.c.h.b16 %v206
    %v282 = vunpack.c.l.b16 %v207
    %v283 = vunpack.c.h.b16 %v207
    %v284 = vunpack.c.l.b16 %v208
    %v285 = vunpack.c.h.b16 %v208
    %v286 = vunpack.c.l.b16 %v209
    %v287 = vunpack.c.h.b16 %v209
    %v288 = vunpack.c.l.b16 %v210
    %v289 = vunpack.c.h.b16 %v210
    %v290 = vunpack.c.l.b16 %v211
    %v291 = vunpack.c.h.b16 %v211
    %v292 = vunpack.c.l.b16 %v212
    %v293 = vunpack.c.h.b16 %v212
    %v294 = vunpack.c.l.b16 %v213
    %v295 = vunpack.c.h.b16 %v213
    %v296 = vunpack.c.l.b16 %v214
    %v297 = vunpack.c.h.b16 %v214
    %v298 = vunpack.c.l.b16 %v215
    %v299 = vunpack.c.h.b16 %v215
    %v300 = vunpack.c.l.b16 %v216
    %v301 = vunpack.c.h.b16 %v216
    %v302 = vunpack.c.l.b16 %v217
    %v303 = vunpack.c.h.b16 %v217
    %v304 = vunpack.c.l.b16 %v218
    %v305 = vunpack.c.h.b16 %v218
    %v306 = vunpack.c.l.b16 %v219
    %v307 = vunpack.c.h.b16 %v219
    %v308 = vunpack.c.l.b16 %v220
    %v309 = vunpack.c.h.b16 %v220
    %v310 = vunpack.c.l.b16 %v221
    %v311 = vunpack.c.h.b16 %v221
    %v312 = vunpack.c.l.b16 %v222
    %v313 = vunpack.c.h.b16 %v222
    %v314 = vunpack.c.l.b16 %v223
    %v315 = vunpack.c.h.b16 %v223
    %v316 = vunpack.c.l.b16 %v224
    %v317 = vunpack.c.h.b16 %v224
    %v318 = vunpack.c.l.b16 %v225
    %v319 = vunpack.c.h.b16 %v225
    %v320 = vunpack.c.l.b16 %v226
    %v321 = vunpack.c.h.b16 %v226
    %v322 = vunpack.c.l.b16 %v227
    %v323 = vunpack.c.h.b16 %v227
    %v324 = vpack.c.b16 %v262, %v260
    %v325 = vpack.c.b16 %v263, %v261
    %v326 = vpack.c.b16 %v266, %v264
    %v327 = vpack.c.b16 %v267, %v265
    %v328 = vpack.c.b16 %v270, %v268
    %v329 = vpack.c.b16 %v271, %v269
    %v330 = vpack.c.b16 %v274, %v272
    %v331 = vpack.c.b16 %v275, %v273
    %v332 = vpack.c.b16 %v278, %v276
    %v333 = vpack.c.b16 %v279, %v277
    %v334 = vpack.c.b16 %v282, %v280
    %v335 = vpack.c.b16 %v283, %v281
    %v336 = vpack.c.b16 %v286, %v284
    %v337 = vpack.c.b16 %v287, %v285
    %v338 = vpack.c.b16 %v290, %v288
    %v339 = vpack.c.b16 %v291, %v289
    %v340 = vpack.c.b16 %v294, %v292
    %v341 = vpack.c.b16 %v295, %v293
    %v342 = vpack.c.b16 %v298, %v296
    %v343 = vpack.c.b16 %v299, %v297
    %v344 = vpack.c.b16 %v302, %v300
    %v345 = vpack.c.b16 %v303, %v301
    %v346 = vpack.c.b16 %v306, %v304
    %v347 = vpack.c.b16 %v307, %v305
    %v348 = vpack.c.b16 %v310, %v308
    %v349 = vpack.c.b16 %v311, %v309
    %v350 = vpack.c.b16 %v314, %v312
    %v351 = vpack.c.b16 %v315, %v313
    %v352 = vpack.c.b16 %v318, %v316
    %v353 = vpack.c.b16 %v319, %v317
    %v354 = vpack.c.b16 %v322, %v320
    %v355 = vpack.c.b16 %v323, %v321
    %388 = vmatprep.subr.bf16.mxu0 %v339
    %389 = vmatpush1.bf16.msra.mxu0 %v338
    %390 = vmatprep.subr.bf16.mxu0 %v337
    %391 = vmatpush1.bf16.msra.mxu0 %v336
    %392 = vmatprep.subr.bf16.mxu0 %v335
    %393 = vmatpush1.bf16.msra.mxu0 %v334
    %394 = vmatprep.subr.bf16.mxu0 %v333
    %395 = vmatpush1.bf16.msra.mxu0 %v332
    %396 = vmatprep.subr.bf16.mxu0 %v331
    %397 = vmatpush1.bf16.msra.mxu0 %v330
    %398 = vmatprep.subr.bf16.mxu0 %v329
    %399 = vmatpush1.bf16.msra.mxu0 %v328
    %400 = vmatprep.subr.bf16.mxu0 %v327
    %401 = vmatpush1.bf16.msra.mxu0 %v326
    %402 = vmatprep.subr.bf16.mxu0 %v325
    %403 = vmatpush1.bf16.msra.mxu0 %v324
    %404 = vmatprep.subr.bf16.mxu0 %v355
    %405 = vmatpush2.bf16.msra.mxu0 %v354
    %406 = vmatprep.subr.bf16.mxu0 %v353
    %407 = vmatpush2.bf16.msra.mxu0 %v352
    %408 = vmatprep.subr.bf16.mxu0 %v351
    %409 = vmatpush2.bf16.msra.mxu0 %v350
    %410 = vmatprep.subr.bf16.mxu0 %v349
    %411 = vmatpush2.bf16.msra.mxu0 %v348
    %412 = vmatprep.subr.bf16.mxu0 %v347
    %413 = vmatpush2.bf16.msra.mxu0 %v346
    %414 = vmatprep.subr.bf16.mxu0 %v345
    %415 = vmatpush2.bf16.msra.mxu0 %v344
    %416 = vmatprep.subr.bf16.mxu0 %v343
    %417 = vmatpush2.bf16.msra.mxu0 %v342
    %418 = vmatprep.subr.bf16.mxu0 %v341
    %419 = vmatpush2.bf16.msra.mxu0 %v340
    %420 = vmatprep.mubr.bf16.mxu0 %v195
    %421 = vmatmul.mubr.bf16.gmra.mxu0 %v194
    %v422 = vpop.f32.mrf.mxu0
    %v423 = vadd.f32 0.0, %v422
    %v424 = vpop.f32.mrf.mxu0
    %v425 = vadd.f32 0.0, %v424
    %v426 = vpop.f32.mrf.mxu0
    %v427 = vadd.f32 0.0, %v426
    %v428 = vpop.f32.mrf.mxu0
    %v429 = vadd.f32 0.0, %v428
    %430 = vdwg.mxu0
    %v431 = vld [vmem:[%s4] sm:$0x3]
    %v433 = vlaneseq
    %v434 = vshrl.u32 %v433, 7
    %v435 = vsub.s32 0, %v434
    %v436 = vrot.slane %v431, %v435
    %v437 = vlaneseq
    %v438 = vshrl.u32 %v437, 7
    %v439 = vsub.s32 1, %v438
    %v440 = vrot.slane %v431, %v439
    %v443 = vadd.f32 %v423, %v436
    %v444 = vadd.f32 %v425, %v440
    %v445 = vld [vmem:[%s5] sm:$0x3]
    %v447 = vlaneseq
    %v448 = vshrl.u32 %v447, 7
    %v449 = vsub.s32 0, %v448
    %v450 = vrot.slane %v445, %v449
    %v451 = vlaneseq
    %v452 = vshrl.u32 %v451, 7
    %v453 = vsub.s32 1, %v452
    %v454 = vrot.slane %v445, %v453
    %v457 = vadd.f32 %v427, %v450
    %v458 = vadd.f32 %v429, %v454
    %vm459 = vcmp.ne.f32.partialorder %v443, %v443
    %vm460 = vcmp.ne.f32.partialorder %v444, %v444
    %v461 = vsel %vm459, 0.0, %v443
    %v462 = vsel %vm460, 0.0, %v444
    %vm463 = vcmp.gt.f32.partialorder %v461, 0.0
    %vm464 = vcmp.gt.f32.partialorder %v462, 0.0
    %v465 = vmul.f32 %v461, 1.442695
    %v466 = vpow.pop %v465
    %v467 = vmul.f32 %v462, 1.442695
    %v468 = vpow.pop %v467
    %v469 = vsub.f32 %v466, 1.0
    %v470 = vsub.f32 %v468, 1.0
    %v471 = vsel %vm463, %v461, %v469
    %v472 = vsel %vm464, %v462, %v470
    %v473 = vmul.f32 %v471, %v457
    %v474 = vmul.f32 %v472, %v458
    %v475 = vpack.c.bf16 0.0, %v471
    %v476 = vpack.c.bf16 0.0, %v472
    %v477 = vpack.c.bf16 %v457, %v473
    %v478 = vpack.c.bf16 %v458, %v474
    %v479 = vld [vmem:[#allocation5] sm:$0xf]
    %v480 = vld [vmem:[#allocation5 + $0x4] sm:$0xf]
    %v481 = vld [vmem:[#allocation5 + $0x8] sm:$0xf]
    %v482 = vld [vmem:[#allocation5 + $0xc] sm:$0xf]
    %v483 = vld [vmem:[#allocation5 + $0x10] sm:$0xf]
    %v484 = vld [vmem:[#allocation5 + $0x14] sm:$0xf]
    %v485 = vld [vmem:[#allocation5 + $0x18] sm:$0xf]
    %v486 = vld [vmem:[#allocation5 + $0x1c] sm:$0xf]
    %v487 = vld [vmem:[#allocation5 + $0x20] sm:$0xf]
    %v488 = vld [vmem:[#allocation5 + $0x24] sm:$0xf]
    %v489 = vld [vmem:[#allocation5 + $0x28] sm:$0xf]
    %v490 = vld [vmem:[#allocation5 + $0x2c] sm:$0xf]
    %v491 = vld [vmem:[#allocation5 + $0x30] sm:$0xf]
    %v492 = vld [vmem:[#allocation5 + $0x34] sm:$0xf]
    %v493 = vld [vmem:[#allocation5 + $0x38] sm:$0xf]
    %v494 = vld [vmem:[#allocation5 + $0x3c] sm:$0xf]
    %v495 = vld [vmem:[#allocation5 + $0x40] sm:$0xf]
    %v496 = vld [vmem:[#allocation5 + $0x44] sm:$0xf]
    %v497 = vld [vmem:[#allocation5 + $0x48] sm:$0xf]
    %v498 = vld [vmem:[#allocation5 + $0x4c] sm:$0xf]
    %v499 = vld [vmem:[#allocation5 + $0x50] sm:$0xf]
    %v500 = vld [vmem:[#allocation5 + $0x54] sm:$0xf]
    %v501 = vld [vmem:[#allocation5 + $0x58] sm:$0xf]
    %v502 = vld [vmem:[#allocation5 + $0x5c] sm:$0xf]
    %v503 = vld [vmem:[#allocation5 + $0x60] sm:$0xf]
    %v504 = vld [vmem:[#allocation5 + $0x64] sm:$0xf]
    %v505 = vld [vmem:[#allocation5 + $0x68] sm:$0xf]
    %v506 = vld [vmem:[#allocation5 + $0x6c] sm:$0xf]
    %v507 = vld [vmem:[#allocation5 + $0x70] sm:$0xf]
    %v508 = vld [vmem:[#allocation5 + $0x74] sm:$0xf]
    %v509 = vld [vmem:[#allocation5 + $0x78] sm:$0xf]
    %v510 = vld [vmem:[#allocation5 + $0x7c] sm:$0xf]
    %v511 = vld [vmem:[#allocation5 + $0x80] sm:$0xf]
    %v512 = vld [vmem:[#allocation5 + $0x84] sm:$0xf]
    %v513 = vld [vmem:[#allocation5 + $0x88] sm:$0xf]
    %v514 = vld [vmem:[#allocation5 + $0x8c] sm:$0xf]
    %v515 = vld [vmem:[#allocation5 + $0x90] sm:$0xf]
    %v516 = vld [vmem:[#allocation5 + $0x94] sm:$0xf]
    %v517 = vld [vmem:[#allocation5 + $0x98] sm:$0xf]
    %v518 = vld [vmem:[#allocation5 + $0x9c] sm:$0xf]
    %v519 = vld [vmem:[#allocation5 + $0xa0] sm:$0xf]
    %v520 = vld [vmem:[#allocation5 + $0xa4] sm:$0xf]
    %v521 = vld [vmem:[#allocation5 + $0xa8] sm:$0xf]
    %v522 = vld [vmem:[#allocation5 + $0xac] sm:$0xf]
    %v523 = vld [vmem:[#allocation5 + $0xb0] sm:$0xf]
    %v524 = vld [vmem:[#allocation5 + $0xb4] sm:$0xf]
    %v525 = vld [vmem:[#allocation5 + $0xb8] sm:$0xf]
    %v526 = vld [vmem:[#allocation5 + $0xbc] sm:$0xf]
    %v527 = vld [vmem:[#allocation5 + $0xc0] sm:$0xf]
    %v528 = vld [vmem:[#allocation5 + $0xc4] sm:$0xf]
    %v529 = vld [vmem:[#allocation5 + $0xc8] sm:$0xf]
    %v530 = vld [vmem:[#allocation5 + $0xcc] sm:$0xf]
    %v531 = vld [vmem:[#allocation5 + $0xd0] sm:$0xf]
    %v532 = vld [vmem:[#allocation5 + $0xd4] sm:$0xf]
    %v533 = vld [vmem:[#allocation5 + $0xd8] sm:$0xf]
    %v534 = vld [vmem:[#allocation5 + $0xdc] sm:$0xf]
    %v535 = vld [vmem:[#allocation5 + $0xe0] sm:$0xf]
    %v536 = vld [vmem:[#allocation5 + $0xe4] sm:$0xf]
    %v537 = vld [vmem:[#allocation5 + $0xe8] sm:$0xf]
    %v538 = vld [vmem:[#allocation5 + $0xec] sm:$0xf]
    %v539 = vld [vmem:[#allocation5 + $0xf0] sm:$0xf]
    %v540 = vld [vmem:[#allocation5 + $0xf4] sm:$0xf]
    %v541 = vld [vmem:[#allocation5 + $0xf8] sm:$0xf]
    %v542 = vld [vmem:[#allocation5 + $0xfc] sm:$0xf]
    %v607 = vunpack.c.l.b16 %v479
    %v608 = vunpack.c.l.b16 %v480
    %v609 = vunpack.c.l.b16 %v481
    %v610 = vunpack.c.l.b16 %v482
    %v611 = vunpack.c.l.b16 %v483
    %v612 = vunpack.c.l.b16 %v484
    %v613 = vunpack.c.l.b16 %v485
    %v614 = vunpack.c.l.b16 %v486
    %v615 = vunpack.c.l.b16 %v487
    %v616 = vunpack.c.l.b16 %v488
    %v617 = vunpack.c.l.b16 %v489
    %v618 = vunpack.c.l.b16 %v490
    %v619 = vunpack.c.l.b16 %v491
    %v620 = vunpack.c.l.b16 %v492
    %v621 = vunpack.c.l.b16 %v493
    %v622 = vunpack.c.l.b16 %v494
    %v623 = vunpack.c.l.b16 %v495
    %v624 = vunpack.c.l.b16 %v496
    %v625 = vunpack.c.l.b16 %v497
    %v626 = vunpack.c.l.b16 %v498
    %v627 = vunpack.c.l.b16 %v499
    %v628 = vunpack.c.l.b16 %v500
    %v629 = vunpack.c.l.b16 %v501
    %v630 = vunpack.c.l.b16 %v502
    %v631 = vunpack.c.l.b16 %v503
    %v632 = vunpack.c.l.b16 %v504
    %v633 = vunpack.c.l.b16 %v505
    %v634 = vunpack.c.l.b16 %v506
    %v635 = vunpack.c.l.b16 %v507
    %v636 = vunpack.c.l.b16 %v508
    %v637 = vunpack.c.l.b16 %v509
    %v638 = vunpack.c.l.b16 %v510
    %v639 = vunpack.c.l.b16 %v511
    %v640 = vunpack.c.l.b16 %v512
    %v641 = vunpack.c.l.b16 %v513
    %v642 = vunpack.c.l.b16 %v514
    %v643 = vunpack.c.l.b16 %v515
    %v644 = vunpack.c.l.b16 %v516
    %v645 = vunpack.c.l.b16 %v517
    %v646 = vunpack.c.l.b16 %v518
    %v647 = vunpack.c.l.b16 %v519
    %v648 = vunpack.c.l.b16 %v520
    %v649 = vunpack.c.l.b16 %v521
    %v650 = vunpack.c.l.b16 %v522
    %v651 = vunpack.c.l.b16 %v523
    %v652 = vunpack.c.l.b16 %v524
    %v653 = vunpack.c.l.b16 %v525
    %v654 = vunpack.c.l.b16 %v526
    %v655 = vunpack.c.l.b16 %v527
    %v656 = vunpack.c.l.b16 %v528
    %v657 = vunpack.c.l.b16 %v529
    %v658 = vunpack.c.l.b16 %v530
    %v659 = vunpack.c.l.b16 %v531
    %v660 = vunpack.c.l.b16 %v532
    %v661 = vunpack.c.l.b16 %v533
    %v662 = vunpack.c.l.b16 %v534
    %v663 = vunpack.c.l.b16 %v535
    %v664 = vunpack.c.l.b16 %v536
    %v665 = vunpack.c.l.b16 %v537
    %v666 = vunpack.c.l.b16 %v538
    %v667 = vunpack.c.l.b16 %v539
    %v668 = vunpack.c.l.b16 %v540
    %v669 = vunpack.c.l.b16 %v541
    %v670 = vunpack.c.l.b16 %v542
    %v671 = vpack.c.b16 %v608, %v607
    %v672 = vpack.c.b16 %v610, %v609
    %v673 = vpack.c.b16 %v612, %v611
    %v674 = vpack.c.b16 %v614, %v613
    %v675 = vpack.c.b16 %v616, %v615
    %v676 = vpack.c.b16 %v618, %v617
    %v677 = vpack.c.b16 %v620, %v619
    %v678 = vpack.c.b16 %v622, %v621
    %v679 = vpack.c.b16 %v624, %v623
    %v680 = vpack.c.b16 %v626, %v625
    %v681 = vpack.c.b16 %v628, %v627
    %v682 = vpack.c.b16 %v630, %v629
    %v683 = vpack.c.b16 %v632, %v631
    %v684 = vpack.c.b16 %v634, %v633
    %v685 = vpack.c.b16 %v636, %v635
    %v686 = vpack.c.b16 %v638, %v637
    %v687 = vpack.c.b16 %v640, %v639
    %v688 = vpack.c.b16 %v642, %v641
    %v689 = vpack.c.b16 %v644, %v643
    %v690 = vpack.c.b16 %v646, %v645
    %v691 = vpack.c.b16 %v648, %v647
    %v692 = vpack.c.b16 %v650, %v649
    %v693 = vpack.c.b16 %v652, %v651
    %v694 = vpack.c.b16 %v654, %v653
    %v695 = vpack.c.b16 %v656, %v655
    %v696 = vpack.c.b16 %v658, %v657
    %v697 = vpack.c.b16 %v660, %v659
    %v698 = vpack.c.b16 %v662, %v661
    %v699 = vpack.c.b16 %v664, %v663
    %v700 = vpack.c.b16 %v666, %v665
    %v701 = vpack.c.b16 %v668, %v667
    %v702 = vpack.c.b16 %v670, %v669
    %735 = vmatprep.subr.bf16.mxu0 0
    %736 = vmatpush1.bf16.msra.mxu0 %v678
    %737 = vmatprep.subr.bf16.mxu0 0
    %738 = vmatpush1.bf16.msra.mxu0 %v677
    %739 = vmatprep.subr.bf16.mxu0 0
    %740 = vmatpush1.bf16.msra.mxu0 %v676
    %741 = vmatprep.subr.bf16.mxu0 0
    %742 = vmatpush1.bf16.msra.mxu0 %v675
    %743 = vmatprep.subr.bf16.mxu0 0
    %744 = vmatpush1.bf16.msra.mxu0 %v674
    %745 = vmatprep.subr.bf16.mxu0 0
    %746 = vmatpush1.bf16.msra.mxu0 %v673
    %747 = vmatprep.subr.bf16.mxu0 0
    %748 = vmatpush1.bf16.msra.mxu0 %v672
    %749 = vmatprep.subr.bf16.mxu0 0
    %750 = vmatpush1.bf16.msra.mxu0 %v671
    %751 = vmatprep.subr.bf16.mxu0 0
    %752 = vmatpush2.bf16.msra.mxu0 %v686
    %753 = vmatprep.subr.bf16.mxu0 0
    %754 = vmatpush2.bf16.msra.mxu0 %v685
    %755 = vmatprep.subr.bf16.mxu0 0
    %756 = vmatpush2.bf16.msra.mxu0 %v684
    %757 = vmatprep.subr.bf16.mxu0 0
    %758 = vmatpush2.bf16.msra.mxu0 %v683
    %759 = vmatprep.subr.bf16.mxu0 0
    %760 = vmatpush2.bf16.msra.mxu0 %v682
    %761 = vmatprep.subr.bf16.mxu0 0
    %762 = vmatpush2.bf16.msra.mxu0 %v681
    %763 = vmatprep.subr.bf16.mxu0 0
    %764 = vmatpush2.bf16.msra.mxu0 %v680
    %765 = vmatprep.subr.bf16.mxu0 0
    %766 = vmatpush2.bf16.msra.mxu0 %v679
    %767 = vmatprep.mubr.bf16.mxu0 %v476
    %768 = vmatmul.mubr.bf16.gmra.mxu0 %v475
    %v769 = vpop.f32.mrf.mxu0
    %v770 = vadd.f32 0.0, %v769
    %v771 = vpop.f32.mrf.mxu0
    %v772 = vpop.f32.mrf.mxu0
    %v773 = vadd.f32 0.0, %v772
    %v774 = vpop.f32.mrf.mxu0
    %775 = vdwg.mxu0
    %776 = vmatprep.subr.bf16.mxu0 0
    %777 = vmatpush1.bf16.msra.mxu0 %v694
    %778 = vmatprep.subr.bf16.mxu0 0
    %779 = vmatpush1.bf16.msra.mxu0 %v693
    %780 = vmatprep.subr.bf16.mxu0 0
    %781 = vmatpush1.bf16.msra.mxu0 %v692
    %782 = vmatprep.subr.bf16.mxu0 0
    %783 = vmatpush1.bf16.msra.mxu0 %v691
    %784 = vmatprep.subr.bf16.mxu0 0
    %785 = vmatpush1.bf16.msra.mxu0 %v690
    %786 = vmatprep.subr.bf16.mxu0 0
    %787 = vmatpush1.bf16.msra.mxu0 %v689
    %788 = vmatprep.subr.bf16.mxu0 0
    %789 = vmatpush1.bf16.msra.mxu0 %v688
    %790 = vmatprep.subr.bf16.mxu0 0
    %791 = vmatpush1.bf16.msra.mxu0 %v687
    %792 = vmatprep.subr.bf16.mxu0 0
    %793 = vmatpush2.bf16.msra.mxu0 %v702
    %794 = vmatprep.subr.bf16.mxu0 0
    %795 = vmatpush2.bf16.msra.mxu0 %v701
    %796 = vmatprep.subr.bf16.mxu0 0
    %797 = vmatpush2.bf16.msra.mxu0 %v700
    %798 = vmatprep.subr.bf16.mxu0 0
    %799 = vmatpush2.bf16.msra.mxu0 %v699
    %800 = vmatprep.subr.bf16.mxu0 0
    %801 = vmatpush2.bf16.msra.mxu0 %v698
    %802 = vmatprep.subr.bf16.mxu0 0
    %803 = vmatpush2.bf16.msra.mxu0 %v697
    %804 = vmatprep.subr.bf16.mxu0 0
    %805 = vmatpush2.bf16.msra.mxu0 %v696
    %806 = vmatprep.subr.bf16.mxu0 0
    %807 = vmatpush2.bf16.msra.mxu0 %v695
    %808 = vmatprep.mubr.bf16.mxu0 %v478
    %809 = vmatmul.mubr.bf16.gmra.mxu0 %v477
    %v810 = vpop.f32.mrf.mxu0
    %v811 = vadd.f32 %v770, %v810
    %v812 = vpop.f32.mrf.mxu0
    %v813 = vpop.f32.mrf.mxu0
    %v814 = vadd.f32 %v773, %v813
    %v815 = vpop.f32.mrf.mxu0
    %816 = vdwg.mxu0
    %v817 = vld [vmem:[%s7] sm:$0x1]
    %v819 = vlaneseq
    %v820 = vshrl.u32 %v819, 7
    %v821 = vsub.s32 0, %v820
    %v822 = vrot.slane %v817, %v821
    %v824 = vadd.f32 %v811, %v822
    %v825 = vld [vmem:[%s8] sm:$0x1]
    %v827 = vlaneseq
    %v828 = vshrl.u32 %v827, 7
    %v829 = vsub.s32 0, %v828
    %v830 = vrot.slane %v825, %v829
    %v832 = vadd.f32 %v814, %v830
    %vm833 = vcmp.ne.f32.partialorder %v824, %v824
    %v834 = vsel %vm833, 0.0, %v824
    %vm835 = vcmp.gt.f32.partialorder %v834, 0.0
    %v836 = vmul.f32 %v834, 1.442695
    %v837 = vpow.pop %v836
    %v838 = vsub.f32 %v837, 1.0
    %v839 = vsel %vm835, %v834, %v838
    %v840 = vmul.f32 %v839, %v832
    %v841 = vpack.c.bf16 0.0, %v839
    %v842 = vpack.c.bf16 %v832, %v840
    %v843 = vld [vmem:[%s9] sm:$0xf]
    %v844 = vld [vmem:[%s9 + $0x4] sm:$0xf]
    %v845 = vld [vmem:[%s9 + $0x8] sm:$0xf]
    %v846 = vld [vmem:[%s9 + $0xc] sm:$0xf]
    %v847 = vld [vmem:[%s9 + $0x10] sm:$0xf]
    %v848 = vld [vmem:[%s9 + $0x14] sm:$0xf]
    %v849 = vld [vmem:[%s9 + $0x18] sm:$0xf]
    %v850 = vld [vmem:[%s9 + $0x1c] sm:$0xf]
    %v851 = vld [vmem:[%s9 + $0x20] sm:$0xf]
    %v852 = vld [vmem:[%s9 + $0x24] sm:$0xf]
    %v853 = vld [vmem:[%s9 + $0x28] sm:$0xf]
    %v854 = vld [vmem:[%s9 + $0x2c] sm:$0xf]
    %v855 = vld [vmem:[%s9 + $0x30] sm:$0xf]
    %v856 = vld [vmem:[%s9 + $0x34] sm:$0xf]
    %v857 = vld [vmem:[%s9 + $0x38] sm:$0xf]
    %v858 = vld [vmem:[%s9 + $0x3c] sm:$0xf]
    %v859 = vld [vmem:[%s9 + $0x40] sm:$0xf]
    %v860 = vld [vmem:[%s9 + $0x44] sm:$0xf]
    %v861 = vld [vmem:[%s9 + $0x48] sm:$0xf]
    %v862 = vld [vmem:[%s9 + $0x4c] sm:$0xf]
    %v863 = vld [vmem:[%s9 + $0x50] sm:$0xf]
    %v864 = vld [vmem:[%s9 + $0x54] sm:$0xf]
    %v865 = vld [vmem:[%s9 + $0x58] sm:$0xf]
    %v866 = vld [vmem:[%s9 + $0x5c] sm:$0xf]
    %v867 = vld [vmem:[%s9 + $0x60] sm:$0xf]
    %v868 = vld [vmem:[%s9 + $0x64] sm:$0xf]
    %v869 = vld [vmem:[%s9 + $0x68] sm:$0xf]
    %v870 = vld [vmem:[%s9 + $0x6c] sm:$0xf]
    %v871 = vld [vmem:[%s9 + $0x70] sm:$0xf]
    %v872 = vld [vmem:[%s9 + $0x74] sm:$0xf]
    %v873 = vld [vmem:[%s9 + $0x78] sm:$0xf]
    %v874 = vld [vmem:[%s9 + $0x7c] sm:$0xf]
    %v907 = vunpack.c.l.b16 %v843
    %v908 = vunpack.c.l.b16 %v844
    %v909 = vunpack.c.l.b16 %v845
    %v910 = vunpack.c.l.b16 %v846
    %v911 = vunpack.c.l.b16 %v847
    %v912 = vunpack.c.l.b16 %v848
    %v913 = vunpack.c.l.b16 %v849
    %v914 = vunpack.c.l.b16 %v850
    %v915 = vunpack.c.l.b16 %v851
    %v916 = vunpack.c.l.b16 %v852
    %v917 = vunpack.c.l.b16 %v853
    %v918 = vunpack.c.l.b16 %v854
    %v919 = vunpack.c.l.b16 %v855
    %v920 = vunpack.c.l.b16 %v856
    %v921 = vunpack.c.l.b16 %v857
    %v922 = vunpack.c.l.b16 %v858
    %v923 = vunpack.c.l.b16 %v859
    %v924 = vunpack.c.l.b16 %v860
    %v925 = vunpack.c.l.b16 %v861
    %v926 = vunpack.c.l.b16 %v862
    %v927 = vunpack.c.l.b16 %v863
    %v928 = vunpack.c.l.b16 %v864
    %v929 = vunpack.c.l.b16 %v865
    %v930 = vunpack.c.l.b16 %v866
    %v931 = vunpack.c.l.b16 %v867
    %v932 = vunpack.c.l.b16 %v868
    %v933 = vunpack.c.l.b16 %v869
    %v934 = vunpack.c.l.b16 %v870
    %v935 = vunpack.c.l.b16 %v871
    %v936 = vunpack.c.l.b16 %v872
    %v937 = vunpack.c.l.b16 %v873
    %v938 = vunpack.c.l.b16 %v874
    %v939 = vpack.c.b16 %v908, %v907
    %v940 = vpack.c.b16 %v910, %v909
    %v941 = vpack.c.b16 %v912, %v911
    %v942 = vpack.c.b16 %v914, %v913
    %v943 = vpack.c.b16 %v916, %v915
    %v944 = vpack.c.b16 %v918, %v917
    %v945 = vpack.c.b16 %v920, %v919
    %v946 = vpack.c.b16 %v922, %v921
    %v947 = vpack.c.b16 %v924, %v923
    %v948 = vpack.c.b16 %v926, %v925
    %v949 = vpack.c.b16 %v928, %v927
    %v950 = vpack.c.b16 %v930, %v929
    %v951 = vpack.c.b16 %v932, %v931
    %v952 = vpack.c.b16 %v934, %v933
    %v953 = vpack.c.b16 %v936, %v935
    %v954 = vpack.c.b16 %v938, %v937
    %971 = vmatprep.subr.bf16.mxu0 0
    %972 = vmatpush1.bf16.msra.mxu0 %v946
    %973 = vmatprep.subr.bf16.mxu0 0
    %974 = vmatpush1.bf16.msra.mxu0 %v945
    %975 = vmatprep.subr.bf16.mxu0 0
    %976 = vmatpush1.bf16.msra.mxu0 %v944
    %977 = vmatprep.subr.bf16.mxu0 0
    %978 = vmatpush1.bf16.msra.mxu0 %v943
    %979 = vmatprep.subr.bf16.mxu0 0
    %980 = vmatpush1.bf16.msra.mxu0 %v942
    %981 = vmatprep.subr.bf16.mxu0 0
    %982 = vmatpush1.bf16.msra.mxu0 %v941
    %983 = vmatprep.subr.bf16.mxu0 0
    %984 = vmatpush1.bf16.msra.mxu0 %v940
    %985 = vmatprep.subr.bf16.mxu0 0
    %986 = vmatpush1.bf16.msra.mxu0 %v939
    %987 = vmatprep.subr.bf16.mxu0 0
    %988 = vmatpush2.bf16.msra.mxu0 %v954
    %989 = vmatprep.subr.bf16.mxu0 0
    %990 = vmatpush2.bf16.msra.mxu0 %v953
    %991 = vmatprep.subr.bf16.mxu0 0
    %992 = vmatpush2.bf16.msra.mxu0 %v952
    %993 = vmatprep.subr.bf16.mxu0 0
    %994 = vmatpush2.bf16.msra.mxu0 %v951
    %995 = vmatprep.subr.bf16.mxu0 0
    %996 = vmatpush2.bf16.msra.mxu0 %v950
    %997 = vmatprep.subr.bf16.mxu0 0
    %998 = vmatpush2.bf16.msra.mxu0 %v949
    %999 = vmatprep.subr.bf16.mxu0 0
    %1000 = vmatpush2.bf16.msra.mxu0 %v948
    %1001 = vmatprep.subr.bf16.mxu0 0
    %1002 = vmatpush2.bf16.msra.mxu0 %v947
    %1003 = vmatprep.mubr.bf16.mxu0 %v842
    %1004 = vmatmul.mubr.bf16.gmra.mxu0 %v841
    %v1005 = vpop.f32.mrf.mxu0
    %v1006 = vadd.f32 0.0, %v1005
    %v1007 = vpop.f32.mrf.mxu0
    %v1008 = vpop.f32.mrf.mxu0
    %v1009 = vadd.f32 0.0, %v1008
    %v1010 = vpop.f32.mrf.mxu0
    %1011 = vdwg.mxu0
    %v1012 = vld [vmem:[%s10] sm:$0x1]
    %v1014 = vlaneseq
    %v1015 = vshrl.u32 %v1014, 7
    %v1016 = vsub.s32 0, %v1015
    %v1017 = vrot.slane %v1012, %v1016
    %v1019 = vadd.f32 %v1006, %v1017
    %v1020 = vld [vmem:[%s11] sm:$0x1]
    %v1022 = vlaneseq
    %v1023 = vshrl.u32 %v1022, 7
    %v1024 = vsub.s32 0, %v1023
    %v1025 = vrot.slane %v1020, %v1024
    %v1027 = vadd.f32 %v1009, %v1025
    %vm1028 = vcmp.ne.f32.partialorder %v1019, %v1019
    %v1029 = vsel %vm1028, 0.0, %v1019
    %vm1030 = vcmp.gt.f32.partialorder %v1029, 0.0
    %v1031 = vmul.f32 %v1029, 1.442695
    %v1032 = vpow.pop %v1031
    %v1033 = vsub.f32 %v1032, 1.0
    %v1034 = vsel %vm1030, %v1029, %v1033
    %v1035 = vmul.f32 %v1034, %v1027
    %1037 = vrot.lane.b32.xlu0 %v1035, 64
    %v1038 = vpop.permute.xlu0 %1037
    %vm1040 = vcmask 523264
    %v1041 = vsel %vm1040, %v1034, %v1038
    %1043 = vrot.lane.b32.xlu0 %v1027, 64
    %v1044 = vpop.permute.xlu0 %1043
    %v1046 = vsel %vm1040, 0.0, %v1044
    %v1047 = vpack.c.bf16 %v1046, %v1041
    %v1048 = vld [vmem:[%s12] sm:$0xf]
    %v1049 = vld [vmem:[%s12 + $0x4] sm:$0xf]
    %v1050 = vld [vmem:[%s12 + $0x8] sm:$0xf]
    %v1051 = vld [vmem:[%s12 + $0xc] sm:$0xf]
    %v1052 = vld [vmem:[%s12 + $0x10] sm:$0xf]
    %v1053 = vld [vmem:[%s12 + $0x14] sm:$0xf]
    %v1054 = vld [vmem:[%s12 + $0x18] sm:$0xf]
    %v1055 = vld [vmem:[%s12 + $0x1c] sm:$0xf]
    %v1056 = vld [vmem:[%s12 + $0x20] sm:$0xf]
    %v1057 = vld [vmem:[%s12 + $0x24] sm:$0xf]
    %v1058 = vld [vmem:[%s12 + $0x28] sm:$0xf]
    %v1059 = vld [vmem:[%s12 + $0x2c] sm:$0xf]
    %v1060 = vld [vmem:[%s12 + $0x30] sm:$0xf]
    %v1061 = vld [vmem:[%s12 + $0x34] sm:$0xf]
    %v1062 = vld [vmem:[%s12 + $0x38] sm:$0xf]
    %v1063 = vld [vmem:[%s12 + $0x3c] sm:$0xf]
    %v1080 = vunpack.c.l.b16 %v1048
    %v1081 = vunpack.c.l.b16 %v1049
    %v1082 = vunpack.c.l.b16 %v1050
    %v1083 = vunpack.c.l.b16 %v1051
    %v1084 = vunpack.c.l.b16 %v1052
    %v1085 = vunpack.c.l.b16 %v1053
    %v1086 = vunpack.c.l.b16 %v1054
    %v1087 = vunpack.c.l.b16 %v1055
    %v1088 = vunpack.c.l.b16 %v1056
    %v1089 = vunpack.c.l.b16 %v1057
    %v1090 = vunpack.c.l.b16 %v1058
    %v1091 = vunpack.c.l.b16 %v1059
    %v1092 = vunpack.c.l.b16 %v1060
    %v1093 = vunpack.c.l.b16 %v1061
    %v1094 = vunpack.c.l.b16 %v1062
    %v1095 = vunpack.c.l.b16 %v1063
    %v1096 = vpack.c.b16 %v1081, %v1080
    %v1097 = vpack.c.b16 %v1083, %v1082
    %v1098 = vpack.c.b16 %v1085, %v1084
    %v1099 = vpack.c.b16 %v1087, %v1086
    %v1100 = vpack.c.b16 %v1089, %v1088
    %v1101 = vpack.c.b16 %v1091, %v1090
    %v1102 = vpack.c.b16 %v1093, %v1092
    %v1103 = vpack.c.b16 %v1095, %v1094
    %1112 = vmatprep.subr.bf16.mxu0 0
    %1113 = vmatpush1.bf16.msra.mxu0 %v1103
    %1114 = vmatprep.subr.bf16.mxu0 0
    %1115 = vmatpush1.bf16.msra.mxu0 %v1102
    %1116 = vmatprep.subr.bf16.mxu0 0
    %1117 = vmatpush1.bf16.msra.mxu0 %v1101
    %1118 = vmatprep.subr.bf16.mxu0 0
    %1119 = vmatpush1.bf16.msra.mxu0 %v1100
    %1120 = vmatprep.subr.bf16.mxu0 0
    %1121 = vmatpush1.bf16.msra.mxu0 %v1099
    %1122 = vmatprep.subr.bf16.mxu0 0
    %1123 = vmatpush1.bf16.msra.mxu0 %v1098
    %1124 = vmatprep.subr.bf16.mxu0 0
    %1125 = vmatpush1.bf16.msra.mxu0 %v1097
    %1126 = vmatprep.subr.bf16.mxu0 0
    %1127 = vmatpush1.bf16.msra.mxu0 %v1096
    %1128 = vmatprep.subr.bf16.mxu0 0
    %1129 = vmatpush2.bf16.msra.mxu0 0
    %1130 = vmatprep.subr.bf16.mxu0 0
    %1131 = vmatpush2.bf16.msra.mxu0 0
    %1132 = vmatprep.subr.bf16.mxu0 0
    %1133 = vmatpush2.bf16.msra.mxu0 0
    %1134 = vmatprep.subr.bf16.mxu0 0
    %1135 = vmatpush2.bf16.msra.mxu0 0
    %1136 = vmatprep.subr.bf16.mxu0 0
    %1137 = vmatpush2.bf16.msra.mxu0 0
    %1138 = vmatprep.subr.bf16.mxu0 0
    %1139 = vmatpush2.bf16.msra.mxu0 0
    %1140 = vmatprep.subr.bf16.mxu0 0
    %1141 = vmatpush2.bf16.msra.mxu0 0
    %1142 = vmatprep.subr.bf16.mxu0 0
    %1143 = vmatpush2.bf16.msra.mxu0 0
    %1144 = vmatprep.mubr.bf16.mxu0 0
    %1145 = vmatmul.mubr.bf16.gmra.mxu0 %v1047
    %v1146 = vpop.f32.mrf.mxu0
    %v1147 = vadd.f32 0.0, %v1146
    %v1148 = vpop.f32.mrf.mxu0
    %v1149 = vpop.f32.mrf.mxu0
    %v1150 = vpop.f32.mrf.mxu0
    %1151 = vdwg.mxu0
    %v1152 = vld [vmem:[%s13] sm:$0x1]
    %v1154 = vlaneseq
    %v1155 = vshrl.u32 %v1154, 7
    %v1156 = vsub.s32 0, %v1155
    %v1157 = vrot.slane %v1152, %v1156
    %v1159 = vadd.f32 %v1147, %v1157
    %vm1160 = vcmp.ne.f32.partialorder %v1159, %v1159
    %v1161 = vsel %vm1160, 0.0, %v1159
    %v1162 = vpack.c.bf16 %v1161, %v1161
    %1163 = vst [vmem:[#allocation7] sm:$0xf] %v1162
    // Predicated region
    $region70: #{tpu_custom_call.1} parent=1 // pred_check
      _
    $region71: #{tpu_custom_call.1} parent=1 // pred_check_branch
      %1165 = sbr.rel (0) target = $region73
    $region72: #{tpu_custom_call.1} parent=1 // pred_region
      %s1167 = ssub.s32 64, 64
      %1168 = vsyncadd [#allocation4], %s1167
      %s1170 = sshll.u32 [#allocation7], 4
      %s1171 = int_to_ptr.vmem [resolvable:$true] %s1170
      %1173 = dma.vmem_to_hbm [thread:$0]  %s1171, 64, %s15, [#allocation4]
    $region73: #{tpu_custom_call.1} parent=1 // pred_fallthru
      _
    // Predicated region
    $region74: #{tpu_custom_call.1} parent=1 // pred_check
      _
    $region75: #{tpu_custom_call.1} parent=1 // pred_check_branch
      %1175 = sbr.rel (0) target = $region77
    $region76: #{tpu_custom_call.1} parent=1 // pred_region
      %1176 = dma.done [#allocation4], 64
    $region77: #{tpu_custom_call.1} parent=1 // pred_fallthru
      _
    %1177 = vsyncpa [#allocation3], 1
    %1178 = vsyncpa [#allocation6], 1
    %1179 = vsyncpa [#allocation4], 1

</llo_original>
